<compile_context>
chip_gen: v7x
topology: tpu7x:2x2x1
jax: 0.10.0
libtpu: 0.0.40
codegen_flags: <defaults>
</compile_context>

<pallas_src>
import functools

import jax
import jax.numpy as jnp
from jax.experimental import pallas as pl
from jax.experimental.pallas import tpu as pltpu


_VMEM_LIMIT_BYTES = 32 * 1024 * 1024   # safe on v5e/v6e (128 MiB phys) and v7x (64 MiB phys)
_FUSED_BLOCK_BUDGET = 3 * 1024 * 1024  # x-block byte budget for the fused grid=(B,) path
_TILE_BLOCK_BUDGET = 2 * 1024 * 1024   # x-block byte budget for the tiled fallback path
_MXU_MIN_C = 128                       # use MXU for the sSE channel reduction when C >= this


def _sse_gate(x_f32, w_sse, use_mxu):
    """q = sigmoid(sum_c w_sse[c] * x[c, :]) -> (1, T)."""
    if use_mxu:
        # w_sse is a (1, C) row: put the C-reduction on the otherwise-idle MXU.
        q = jnp.dot(w_sse, x_f32, preferred_element_type=jnp.float32)
    else:
        # w_sse is a (C, 1) column: VPU multiply + sublane reduce (small C).
        q = jnp.sum(x_f32 * w_sse, axis=0, keepdims=True)
    return jax.nn.sigmoid(q)


def _scse_fused_kernel(x_ref, w_sse_ref, w_sq_t_ref, w_exc_ref, o_ref, *, use_mxu):
    # x_ref:      (1, C, HW)       one full batch element (lanes = spatial)
    # w_sse_ref:  (C, 1) or (1, C) sSE 1x1 conv weight
    # w_sq_t_ref: (C, C//2)        Conv_Squeeze weight, transposed
    # w_exc_ref:  (C, C//2)        Conv_Excitation weight, natural layout
    # o_ref:      (1, C, HW)
    x = x_ref[0].astype(jnp.float32)                               # (C, HW)

    # ---- cSE channel gate (tiny; broadcast-mul + axis reductions, no transposes) ----
    m = jnp.mean(x, axis=1, keepdims=True)                         # (C, 1)     lane reduce
    z1 = jnp.sum(w_sq_t_ref[...] * m, axis=0, keepdims=True)       # (1, C//2)  sublane reduce
    z = jax.nn.sigmoid(
        jnp.sum(w_exc_ref[...] * z1, axis=1, keepdims=True))       # (C, 1)     lane reduce

    # ---- sSE per-pixel gate ----
    q = _sse_gate(x, w_sse_ref[...], use_mxu)                      # (1, HW)

    # out = U*q + U*z = U * (q + z)
    o_ref[0] = (x * (q + z)).astype(o_ref.dtype)


def _scse_tiled_kernel(x_ref, w_sse_ref, z_ref, o_ref, *, use_mxu):
    # x_ref: (1, C, T) one spatial tile; z_ref: (1, C, 1) precomputed cSE gate.
    x = x_ref[0].astype(jnp.float32)                               # (C, T)
    q = _sse_gate(x, w_sse_ref[...], use_mxu)                      # (1, T)
    o_ref[0] = (x * (q + z_ref[0])).astype(o_ref.dtype)


def _pick_spatial_tile(hw, c, itemsize, budget_bytes):
    """Lane tile T: multiple of 128 sized so C*T*itemsize ~= budget; full extent if small."""
    t = (budget_bytes // max(1, c * itemsize)) // 128 * 128
    t = max(t, 128)
    if t >= hw:
        return hw            # a single full-extent block is always a legal block shape
    return t


def scse_forward(x_nchw, w_sse, w_sq, w_exc, *,
                 fused_budget_bytes=_FUSED_BLOCK_BUDGET,
                 tile_budget_bytes=_TILE_BLOCK_BUDGET):
    """scSE forward. x_nchw: (B, C, H, W). Weights in PyTorch conv layouts:
       w_sse (1, C, 1, 1), w_sq (C//2, C, 1, 1), w_exc (C, C//2, 1, 1)."""
    B, C, H, W = x_nchw.shape
    HW = H * W
    Cs = w_sq.shape[0]                                   # C // 2
    itemsize = jnp.dtype(x_nchw.dtype).itemsize

    # Free reshape (no data movement): channels on sublanes, spatial on lanes.
    x = x_nchw.reshape(B, C, HW)

    w_sq_m = w_sq.reshape(Cs, C).astype(jnp.float32)     # (C//2, C)
    w_exc_m = w_exc.reshape(C, Cs).astype(jnp.float32)   # (C, C//2)
    use_mxu = C >= _MXU_MIN_C
    w_sse_arg = (w_sse.reshape(1, C) if use_mxu
                 else w_sse.reshape(1, C).T).astype(jnp.float32)

    if C * HW * itemsize <= fused_budget_bytes:
        # ---- Fused single-pass path: x read once, written once (2*|x| HBM traffic). ----
        # TODO(synk): with B == 1 this grid has a single step, leaving one v7x TC idle.
        kernel = functools.partial(_scse_fused_kernel, use_mxu=use_mxu)
        out = pl.pallas_call(
            kernel,
            out_shape=jax.ShapeDtypeStruct((B, C, HW), x.dtype),
            grid_spec=pltpu.PrefetchScalarGridSpec(
                num_scalar_prefetch=0,
                grid=(B,),
                in_specs=[
                    pl.BlockSpec((1, C, HW), lambda b: (b, 0, 0)),
                    pl.BlockSpec(w_sse_arg.shape, lambda b: (0, 0)),
                    pl.BlockSpec((C, Cs), lambda b: (0, 0)),
                    pl.BlockSpec((C, Cs), lambda b: (0, 0)),
                ],
                out_specs=pl.BlockSpec((1, C, HW), lambda b: (b, 0, 0)),
            ),
            compiler_params=pltpu.CompilerParams(
                dimension_semantics=("parallel",),
                vmem_limit_bytes=_VMEM_LIMIT_BYTES),
            cost_estimate=pl.CostEstimate(
                flops=5 * B * C * HW,
                transcendentals=B * (HW + C),
                bytes_accessed=2 * B * C * HW * itemsize),
        )(x, w_sse_arg, w_sq_m.T, w_exc_m)
    else:
        # ---- Fallback for very large C*H*W: cSE gate via one XLA streaming pass,
        #      then byte-budgeted lane tiles with a cdiv grid (masked last tile). ----
        m = jnp.mean(x.astype(jnp.float32), axis=2)               # (B, C)
        z = jax.nn.sigmoid((m @ w_sq_m.T) @ w_exc_m.T)            # (B, C)
        z = z.reshape(B, C, 1)

        T = _pick_spatial_tile(HW, C, itemsize, tile_budget_bytes)
        grid = (B, pl.cdiv(HW, T))
        kernel = functools.partial(_scse_tiled_kernel, use_mxu=use_mxu)
        out = pl.pallas_call(
            kernel,
            out_shape=jax.ShapeDtypeStruct((B, C, HW), x.dtype),
            grid_spec=pltpu.PrefetchScalarGridSpec(
                num_scalar_prefetch=0,
                grid=grid,
                in_specs=[
                    pl.BlockSpec((1, C, T), lambda b, s: (b, 0, s)),
                    pl.BlockSpec(w_sse_arg.shape, lambda b, s: (0, 0)),
                    pl.BlockSpec((1, C, 1), lambda b, s: (b, 0, 0)),
                ],
                out_specs=pl.BlockSpec((1, C, T), lambda b, s: (b, 0, s)),
            ),
            compiler_params=pltpu.CompilerParams(
                dimension_semantics=("parallel", "parallel"),
                vmem_limit_bytes=_VMEM_LIMIT_BYTES),
            cost_estimate=pl.CostEstimate(
                flops=4 * B * C * HW,
                transcendentals=B * HW,
                bytes_accessed=3 * B * C * HW * itemsize),
        )(x, w_sse_arg, z)

    # Free reshape back to NCHW.
    return out.reshape(B, C, H, W)


def scse_reference(x_nchw, w_sse, w_sq, w_exc):
    """Plain-JAX reference mirroring the PyTorch module exactly (bias=False, no ReLU)."""
    B, C, H, W = x_nchw.shape
    Cs = w_sq.shape[0]
    # sSE
    q = jnp.einsum('bchw,oc->bohw', x_nchw, w_sse.reshape(1, C))   # (B,1,H,W)
    q = jax.nn.sigmoid(q)
    u_sse = x_nchw * q
    # cSE
    z = jnp.mean(x_nchw, axis=(2, 3), keepdims=True)               # (B,C,1,1)
    z = jnp.einsum('bchw,oc->bohw', z, w_sq.reshape(Cs, C))
    z = jnp.einsum('bchw,oc->bohw', z, w_exc.reshape(C, Cs))
    z = jax.nn.sigmoid(z)
    u_cse = x_nchw * z
    return u_cse + u_sse


if __name__ == "__main__":
    B, C, H, W = 2, 4, 16, 16

    key = jax.random.PRNGKey(0)
    kx, k1, k2, k3 = jax.random.split(key, 4)

    x = jax.random.normal(kx, (B, C, H, W), dtype=jnp.float32)
    w_sse = jax.random.normal(k1, (1, C, 1, 1), dtype=jnp.float32) * 0.5
    w_sq = jax.random.normal(k2, (C // 2, C, 1, 1), dtype=jnp.float32) * 0.5
    w_exc = jax.random.normal(k3, (C, C // 2, 1, 1), dtype=jnp.float32) * 0.5

    ref = scse_reference(x, w_sse, w_sq, w_exc)

    # 1) Fused single-pass path (the common case).
    out_fused = jax.block_until_ready(scse_forward(x, w_sse, w_sq, w_exc))
    assert out_fused.shape == (B, C, H, W)
    assert jnp.allclose(out_fused, ref, atol=1e-5, rtol=1e-5), "fused path mismatch"

    # 2) Tiled fallback path (forced), 128-lane tiles that divide HW evenly.
    out_tiled = jax.block_until_ready(
        scse_forward(x, w_sse, w_sq, w_exc,
                     fused_budget_bytes=0, tile_budget_bytes=C * 128 * 4))
    assert jnp.allclose(out_tiled, ref, atol=1e-5, rtol=1e-5), "tiled path mismatch"

    # 3) Tiled fallback with a non-dividing spatial extent -> cdiv grid, masked last tile.
    H2, W2 = 16, 12                      # HW = 192, not a multiple of the 128-lane tile
    x2 = jax.random.normal(kx, (B, C, H2, W2), dtype=jnp.float32)
    ref2 = scse_reference(x2, w_sse, w_sq, w_exc)
    out2 = jax.block_until_ready(
        scse_forward(x2, w_sse, w_sq, w_exc,
                     fused_budget_bytes=0, tile_budget_bytes=C * 128 * 4))
    assert jnp.allclose(out2, ref2, atol=1e-5, rtol=1e-5), "partial-tile path mismatch"

    print("KERNEL_OK")
</pallas_src>

<mosaic_0001>
module attributes {stable_mosaic.version = 11 : i64} {
  func.func @_scse_fused_kernel(%arg0: i32, %arg1: memref<1x4x256xf32, #tpu.memory_space<vmem>>, %arg2: memref<4x1xf32, #tpu.memory_space<vmem>>, %arg3: memref<4x2xf32, #tpu.memory_space<vmem>>, %arg4: memref<4x2xf32, #tpu.memory_space<vmem>>, %arg5: memref<1x4x256xf32, #tpu.memory_space<vmem>>) attributes {dimension_semantics = [#tpu.dimension_semantics<parallel>], iteration_bounds = array<i64: 2>, scalar_prefetch = 0 : i64, scratch_operands = 0 : i64, tpu.core_type = #tpu.core_type<tc>, window_params = [{transform_indices = @transform_0, window_bounds = array<i64: 1, 4, 256>}, {pipeline_mode = #tpu.pipeline_mode<synchronous>, transform_indices = @transform_1, window_bounds = array<i64: 4, 1>}, {pipeline_mode = #tpu.pipeline_mode<synchronous>, transform_indices = @transform_2, window_bounds = array<i64: 4, 2>}, {pipeline_mode = #tpu.pipeline_mode<synchronous>, transform_indices = @transform_3, window_bounds = array<i64: 4, 2>}, {transform_indices = @transform_4, window_bounds = array<i64: 1, 4, 256>}]} {
    %c0 = arith.constant 0 : index
    %c0_0 = arith.constant 0 : index
    %c0_1 = arith.constant 0 : index
    %0 = vector.load %arg1[%c0, %c0_0, %c0_1] : memref<1x4x256xf32, #tpu.memory_space<vmem>>, vector<1x4x256xf32>
    %1 = vector.shape_cast %0 : vector<1x4x256xf32> to vector<4x256xf32>
    %cst = arith.constant dense<0.000000e+00> : vector<4xf32>
    %2 = vector.multi_reduction <add>, %1, %cst [1] : vector<4x256xf32> to vector<4xf32>
    %3 = vector.shape_cast %2 : vector<4xf32> to vector<4x1xf32>
    %cst_2 = arith.constant 2.560000e+02 : f32
    %4 = vector.broadcast %cst_2 : f32 to vector<4x1xf32>
    %5 = arith.divf %3, %4 : vector<4x1xf32>
    %c0_3 = arith.constant 0 : index
    %c0_4 = arith.constant 0 : index
    %6 = vector.load %arg3[%c0_3, %c0_4] : memref<4x2xf32, #tpu.memory_space<vmem>>, vector<4x2xf32>
    %7 = vector.broadcast %5 : vector<4x1xf32> to vector<4x2xf32>
    %8 = arith.mulf %6, %7 : vector<4x2xf32>
    %cst_5 = arith.constant dense<0.000000e+00> : vector<2xf32>
    %9 = vector.multi_reduction <add>, %8, %cst_5 [0] : vector<4x2xf32> to vector<2xf32>
    %10 = vector.shape_cast %9 : vector<2xf32> to vector<1x2xf32>
    %c0_6 = arith.constant 0 : index
    %c0_7 = arith.constant 0 : index
    %11 = vector.load %arg4[%c0_6, %c0_7] : memref<4x2xf32, #tpu.memory_space<vmem>>, vector<4x2xf32>
    %12 = vector.broadcast %10 : vector<1x2xf32> to vector<4x2xf32>
    %13 = arith.mulf %11, %12 : vector<4x2xf32>
    %cst_8 = arith.constant dense<0.000000e+00> : vector<4xf32>
    %14 = vector.multi_reduction <add>, %13, %cst_8 [1] : vector<4x2xf32> to vector<4xf32>
    %15 = vector.shape_cast %14 : vector<4xf32> to vector<4x1xf32>
    %16 = arith.negf %15 : vector<4x1xf32>
    %17 = math.exp %16 : vector<4x1xf32>
    %cst_9 = arith.constant 1.000000e+00 : f32
    %18 = vector.broadcast %cst_9 : f32 to vector<4x1xf32>
    %19 = arith.addf %18, %17 : vector<4x1xf32>
    %20 = arith.divf %18, %19 : vector<4x1xf32>
    %c0_10 = arith.constant 0 : index
    %c0_11 = arith.constant 0 : index
    %21 = vector.load %arg2[%c0_10, %c0_11] : memref<4x1xf32, #tpu.memory_space<vmem>>, vector<4x1xf32>
    %22 = vector.broadcast %21 : vector<4x1xf32> to vector<4x256xf32>
    %23 = arith.mulf %1, %22 : vector<4x256xf32>
    %cst_12 = arith.constant dense<0.000000e+00> : vector<256xf32>
    %24 = vector.multi_reduction <add>, %23, %cst_12 [0] : vector<4x256xf32> to vector<256xf32>
    %25 = vector.shape_cast %24 : vector<256xf32> to vector<1x256xf32>
    %26 = arith.negf %25 : vector<1x256xf32>
    %27 = math.exp %26 : vector<1x256xf32>
    %cst_13 = arith.constant 1.000000e+00 : f32
    %28 = vector.broadcast %cst_13 : f32 to vector<1x256xf32>
    %29 = arith.addf %28, %27 : vector<1x256xf32>
    %30 = arith.divf %28, %29 : vector<1x256xf32>
    %31 = vector.broadcast %30 : vector<1x256xf32> to vector<4x256xf32>
    %32 = vector.broadcast %20 : vector<4x1xf32> to vector<4x256xf32>
    %33 = arith.addf %31, %32 : vector<4x256xf32>
    %34 = arith.mulf %1, %33 : vector<4x256xf32>
    %c0_14 = arith.constant 0 : index
    %c0_15 = arith.constant 0 : index
    %c0_16 = arith.constant 0 : index
    %35 = vector.load %arg5[%c0_14, %c0_15, %c0_16] : memref<1x4x256xf32, #tpu.memory_space<vmem>>, vector<1x4x256xf32>
    %36 = vector.shape_cast %35 : vector<1x4x256xf32> to vector<4x256xf32>
    %37 = vector.shape_cast %34 : vector<4x256xf32> to vector<1x4x256xf32>
    tpu.vector_store %arg5[%c0_14, %c0_15, %c0_16], %37 {strides = array<i32>} : memref<1x4x256xf32, #tpu.memory_space<vmem>>, vector<1x4x256xf32>,
    return
  }
  func.func @transform_0(%arg0: i32) -> (i32, i32, i32) {
    %c0_i32 = arith.constant 0 : i32
    %c0_i32_0 = arith.constant 0 : i32
    %c0_i32_1 = arith.constant 0 : i32
    return %arg0, %c0_i32, %c0_i32_0 : i32, i32, i32
  }
  func.func @transform_1(%arg0: i32) -> (i32, i32) {
    %c0_i32 = arith.constant 0 : i32
    %c0_i32_0 = arith.constant 0 : i32
    %c0_i32_1 = arith.constant 0 : i32
    return %c0_i32, %c0_i32_0 : i32, i32
  }
  func.func @transform_2(%arg0: i32) -> (i32, i32) {
    %c0_i32 = arith.constant 0 : i32
    %c0_i32_0 = arith.constant 0 : i32
    %c0_i32_1 = arith.constant 0 : i32
    return %c0_i32, %c0_i32_0 : i32, i32
  }
  func.func @transform_3(%arg0: i32) -> (i32, i32) {
    %c0_i32 = arith.constant 0 : i32
    %c0_i32_0 = arith.constant 0 : i32
    %c0_i32_1 = arith.constant 0 : i32
    return %c0_i32, %c0_i32_0 : i32, i32
  }
  func.func @transform_4(%arg0: i32) -> (i32, i32, i32) {
    %c0_i32 = arith.constant 0 : i32
    %c0_i32_0 = arith.constant 0 : i32
    %c0_i32_1 = arith.constant 0 : i32
    return %arg0, %c0_i32, %c0_i32_0 : i32, i32, i32
  }
}

</mosaic_0001>

<llo_original>
// kernel: tpu_custom_call.1
$region0: #{tpu_custom_call.1}
  #allocation0 [shape = 'u32[]', space=smem, size = 0x4, offset = 0x4, fixed_abs, tag = 'smem constant byte address 0x4 - core index']
  #allocation1 [shape = 'u32[144,128]{1,0:T(1,128)}', space=vmem, size = 0x12000, scoped, tag = 'internal scratch']
  %s0 = inlined_call_operand.vmem [shape: f32[2,4,256], index: 0, kind: input, shape index: {}]
  %s1 = inlined_call_operand.vmem [shape: f32[4,1], index: 1, kind: input, shape index: {}]
  %s2 = inlined_call_operand.vmem [shape: f32[4,2], index: 2, kind: input, shape index: {}]
  %s3 = inlined_call_operand.vmem [shape: f32[4,2], index: 3, kind: input, shape index: {}]
  %s4 = inlined_call_operand.hbm [shape: f32[2,4,256], index: 4, kind: output, shape index: {}]
  %s5 = sld [smem:[#allocation0]]
  $region49: #{tpu_custom_call.1} parent=0
    _
  %s7 = ssub.s32 1, %s5
  %s8 = scalar_select 0, %s7, %s5
  $region1: #{tpu_custom_call.1} parent=0
    #allocation2 [shape = 'u8[8192]{0}', space=vmem, size = 0x2000, scoped, tag = 'output window, operand 0']
    #allocation3 [shape = 's32[2]{0}', space=sflag, size = 0x8, scoped, tag = 'scoped memory for tpu_custom_call.1']
    %9 = vsyncpa [#allocation3], 0
    %s10 = scalar_lea.sflag [#allocation3], 1
    %11 = vsyncpa %s10, 0
    loop: start=0, step=1, limit=4
    $region2: #{tpu_custom_call.1} parent=1 // loop_pre_header
      _
    $region3: #{tpu_custom_call.1} parent=1 // loop_header
      %s13 = sphi 0, %s17
      %p14 = scmp.ge.s32.totalorder %s13, 4
      %s23 = sphi 0, %s25
      %s26 = sphi 0, %s23
      %s27 = sphi 0, %s26
      %s43 = sphi 0, %s27
      %s47 = sphi 0, %s47
      %s49 = sphi 0, %s47
      %s50 = sphi 0, %s49
      %s64 = sphi 0, %s50
      %s68 = sphi 0, %s68
      %s70 = sphi 0, %s68
      %s71 = sphi 0, %s70
      %s85 = sphi 0, %s71
      %s89 = sphi 0, %s89
      %s91 = sphi 0, %s89
      %s92 = sphi 0, %s91
      %s106 = sphi 0, %s92
      %s112 = sphi 0, %s114
      %s115 = sphi 0, %s112
      %s116 = sphi 0, %s115
      %s132 = sphi 0, %s116
    $region4: #{tpu_custom_call.1} parent=1 // loop_header_branch
      %16 = sbr.rel (%p14) target = $region8
    $region5: #{tpu_custom_call.1} parent=1 // loop_body
      %s18 = ssub.s32 %s13, 1
      %s19 = ssub.s32 %s13, 2
      %s20 = sadd.s32 %s13, 1
      %s21 = ssub.s32 %s13, %s20
      %p22 = scmp.eq.s32.totalorder %s21, 0
      %s24 = sadd.s32 %s23, 1
      %s25 = scalar_select %p22, %s23, %s24
      %p28 = pneg %p22
      %p29 = scmp.eq.s32.totalorder %s13, 1
      %p30 = por %p28, %p29
      %p31 = scmp.ne.s32.totalorder %s23, %s26
      %p32 = scmp.eq.s32.totalorder %s13, 0
      %p33 = por %p31, %p32
      %p34 = scmp.ne.s32.totalorder %s23, %s26
      %p35 = scmp.eq.s32.totalorder %s18, 1
      %p36 = por %p34, %p35
      %p37 = scmp.ne.s32.totalorder %s26, %s27
      %p38 = scmp.eq.s32.totalorder %s18, 0
      %p39 = por %p37, %p38
      %p40 = scmp.ne.s32.totalorder %s26, %s27
      %p41 = scmp.eq.s32.totalorder %s19, 1
      %p42 = por %p40, %p41
      %p44 = scmp.ne.s32.totalorder %s27, %s43
      %p45 = scmp.eq.s32.totalorder %s19, 0
      %p46 = por %p44, %p45
      %s48 = sadd.s32 %s47, 1
      %p51 = scmp.eq.s32.totalorder %s13, 1
      %p52 = scmp.ne.s32.totalorder %s47, %s49
      %p53 = scmp.eq.s32.totalorder %s13, 0
      %p54 = por %p52, %p53
      %p55 = scmp.ne.s32.totalorder %s47, %s49
      %p56 = scmp.eq.s32.totalorder %s18, 1
      %p57 = por %p55, %p56
      %p58 = scmp.ne.s32.totalorder %s49, %s50
      %p59 = scmp.eq.s32.totalorder %s18, 0
      %p60 = por %p58, %p59
      %p61 = scmp.ne.s32.totalorder %s49, %s50
      %p62 = scmp.eq.s32.totalorder %s19, 1
      %p63 = por %p61, %p62
      %p65 = scmp.ne.s32.totalorder %s50, %s64
      %p66 = scmp.eq.s32.totalorder %s19, 0
      %p67 = por %p65, %p66
      %s69 = sadd.s32 %s68, 1
      %p72 = scmp.eq.s32.totalorder %s13, 1
      %p73 = scmp.ne.s32.totalorder %s68, %s70
      %p74 = scmp.eq.s32.totalorder %s13, 0
      %p75 = por %p73, %p74
      %p76 = scmp.ne.s32.totalorder %s68, %s70
      %p77 = scmp.eq.s32.totalorder %s18, 1
      %p78 = por %p76, %p77
      %p79 = scmp.ne.s32.totalorder %s70, %s71
      %p80 = scmp.eq.s32.totalorder %s18, 0
      %p81 = por %p79, %p80
      %p82 = scmp.ne.s32.totalorder %s70, %s71
      %p83 = scmp.eq.s32.totalorder %s19, 1
      %p84 = por %p82, %p83
      %p86 = scmp.ne.s32.totalorder %s71, %s85
      %p87 = scmp.eq.s32.totalorder %s19, 0
      %p88 = por %p86, %p87
      %s90 = sadd.s32 %s89, 1
      %p93 = scmp.eq.s32.totalorder %s13, 1
      %p94 = scmp.ne.s32.totalorder %s89, %s91
      %p95 = scmp.eq.s32.totalorder %s13, 0
      %p96 = por %p94, %p95
      %p97 = scmp.ne.s32.totalorder %s89, %s91
      %p98 = scmp.eq.s32.totalorder %s18, 1
      %p99 = por %p97, %p98
      %p100 = scmp.ne.s32.totalorder %s91, %s92
      %p101 = scmp.eq.s32.totalorder %s18, 0
      %p102 = por %p100, %p101
      %p103 = scmp.ne.s32.totalorder %s91, %s92
      %p104 = scmp.eq.s32.totalorder %s19, 1
      %p105 = por %p103, %p104
      %p107 = scmp.ne.s32.totalorder %s92, %s106
      %p108 = scmp.eq.s32.totalorder %s19, 0
      %p109 = por %p107, %p108
      %s110 = ssub.s32 %s13, %s20
      %p111 = scmp.eq.s32.totalorder %s110, 0
      %s113 = sadd.s32 %s112, 1
      %s114 = scalar_select %p111, %s112, %s113
      %p117 = pneg %p111
      %p118 = scmp.eq.s32.totalorder %s13, 1
      %p119 = por %p117, %p118
      %p120 = scmp.ne.s32.totalorder %s112, %s115
      %p121 = scmp.eq.s32.totalorder %s13, 0
      %p122 = por %p120, %p121
      %p123 = scmp.ne.s32.totalorder %s112, %s115
      %p124 = scmp.eq.s32.totalorder %s18, 1
      %p125 = por %p123, %p124
      %p126 = scmp.ne.s32.totalorder %s115, %s116
      %p127 = scmp.eq.s32.totalorder %s18, 0
      %p128 = por %p126, %p127
      %p129 = scmp.ne.s32.totalorder %s115, %s116
      %p130 = scmp.eq.s32.totalorder %s19, 1
      %p131 = por %p129, %p130
      %p133 = scmp.ne.s32.totalorder %s116, %s132
      %p134 = scmp.eq.s32.totalorder %s19, 0
      %p135 = por %p133, %p134
      %p136 = scmp.le.s32.totalorder 1, %s13
      %p137 = scmp.lt.s32.totalorder %s13, 3
      %p138 = pnand %p136, %p137
      %p139 = pneg %p138
      // Predicated region
      $region9: #{tpu_custom_call.1} parent=5 // pred_check
        _
      $region10: #{tpu_custom_call.1} parent=5 // pred_check_branch
        %141 = sbr.rel (%p138) target = $region12
      $region11: #{tpu_custom_call.1} parent=5 // pred_region
        %s142 = ssub.s32 %s13, 1
        // Predicated region
        $region13: #{tpu_custom_call.1} parent=11 // pred_check
          %p143 = pneg %p60
        $region14: #{tpu_custom_call.1} parent=11 // pred_check_branch
          %145 = sbr.rel (%p143) target = $region16
        $region15: #{tpu_custom_call.1} parent=11 // pred_region
          _
        $region16: #{tpu_custom_call.1} parent=11 // pred_fallthru
          _
        // Predicated region
        $region17: #{tpu_custom_call.1} parent=11 // pred_check
          %p146 = pneg %p81
        $region18: #{tpu_custom_call.1} parent=11 // pred_check_branch
          %148 = sbr.rel (%p146) target = $region20
        $region19: #{tpu_custom_call.1} parent=11 // pred_region
          _
        $region20: #{tpu_custom_call.1} parent=11 // pred_fallthru
          _
        // Predicated region
        $region21: #{tpu_custom_call.1} parent=11 // pred_check
          %p149 = pneg %p102
        $region22: #{tpu_custom_call.1} parent=11 // pred_check_branch
          %151 = sbr.rel (%p149) target = $region24
        $region23: #{tpu_custom_call.1} parent=11 // pred_region
          _
        $region24: #{tpu_custom_call.1} parent=11 // pred_fallthru
          _
      $region12: #{tpu_custom_call.1} parent=5 // pred_fallthru
        _
      %p152 = scmp.lt.s32.totalorder %s13, 2
      // Predicated region
      $region25: #{tpu_custom_call.1} parent=5 // pred_check
        %p153 = pneg %p152
      $region26: #{tpu_custom_call.1} parent=5 // pred_check_branch
        %155 = sbr.rel (%p153) target = $region28
      $region27: #{tpu_custom_call.1} parent=5 // pred_region
        // Predicated region
        $region29: #{tpu_custom_call.1} parent=27 // pred_check
          %p156 = pneg %p33
        $region30: #{tpu_custom_call.1} parent=27 // pred_check_branch
          %158 = sbr.rel (%p156) target = $region32
        $region31: #{tpu_custom_call.1} parent=27 // pred_region
          %p159 = scmp.lt.s32.totalorder %s13, 1
          %s160 = scalar_select %p159, %s13, 1
          %s161 = smul.addr %s160, 2
          %s162 = smul.addr %s161, 4
          %s163 = scalar_lea.vmem %s0, %s162
        $region32: #{tpu_custom_call.1} parent=27 // pred_fallthru
          _
      $region28: #{tpu_custom_call.1} parent=5 // pred_fallthru
        _
      %p164 = scmp.le.s32.totalorder 1, %s13
      %p165 = scmp.lt.s32.totalorder %s13, 3
      %p166 = pnand %p164, %p165
      %p167 = pneg %p166
      // Predicated region
      $region33: #{tpu_custom_call.1} parent=5 // pred_check
        _
      $region34: #{tpu_custom_call.1} parent=5 // pred_check_branch
        %169 = sbr.rel (%p166) target = $region36
      $region35: #{tpu_custom_call.1} parent=5 // pred_region
        %s170 = ssub.s32 %s13, 1
        %p171 = scmp.lt.s32.totalorder %s18, 1
        %s172 = scalar_select %p171, %s18, 1
        %s173 = smul.addr %s172, 2
        %s174 = smul.addr %s173, 4
        %s175 = scalar_lea.vmem %s0, %s174
        %p176 = pneg %p39
        %p177 = pneg %p36
        %p178 = pneg %p60
        %p179 = pneg %p57
        %p180 = pneg %p81
        %p181 = pneg %p78
        %p182 = pneg %p102
        %p183 = pneg %p99
        %p184 = pneg %p128
        %p185 = pneg %p125
        %s186 = sand.u32 %s115, 1
        %s187 = scalar_lea.sflag [#allocation3], %s186
        %s188 = sand.u32 %s115, 1
        %s189 = smul.addr %s188, 8
        %s190 = scalar_lea.vmem [#allocation2], %s189
        %p191 = scmp.lt.s32.totalorder %s18, 1
        %s192 = scalar_select %p191, %s18, 1
        %s193 = smul.addr %s192, 2
        %s194 = smul.addr %s193, 4
        %s195 = scalar_lea.vmem %s0, %s194
        %v196 = vld [vmem:[%s195] sm:$0xff]
        %v198 = vcombine.high %v196, %v196
        %vm200 = vcmask 1043456
        %v201 = vsel %vm200, %v196, 0.0
        %v202 = vsel %vm200, %v198, 0.0
        %v203 = vadd.f32 %v201, %v202
        %204 = vadd.xlane.f32.xlu0 %v203
        %v205 = vpop.xlane.xlu0 %204
        %v206 = vrcp.pop 256.0
        %v207 = vmul.f32 %v205, %v206
        %v208 = vld [vmem:[%s2] sm:$0xf]
        %v209 = vmul.f32 %v208, %v207
        %vm210 = vcmask 11264
        %v211 = vsel %vm210, %v209, 0.0
        %v212 = vrot.slane %v211, 4
        %v213 = vadd.f32 %v211, %v212
        %v214 = vrot.slane %v213, 2
        %v215 = vadd.f32 %v213, %v214
        %v216 = vrot.slane %v215, 1
        %v217 = vadd.f32 %v215, %v216
        %v218 = vld [vmem:[%s3] sm:$0xf]
        %v219 = vmul.f32 %v218, %v217
        %v220 = vsel %vm210, %v219, 0.0
        %221 = vadd.xlane.f32.xlu0 %v220
        %v222 = vpop.xlane.xlu0 %221
        %v223 = vxor.u32 %v222, 2147483648
        %v224 = vmul.f32 %v223, 1.442695
        %v225 = vpow.pop %v224
        %v226 = vadd.f32 %v225, 1.0
        %v227 = vrcp.pop %v226
        %v228 = vmul.f32 1.0, %v227
        %v229 = vld [vmem:[%s1] sm:$0xf]
        %231 = vset.pattern.permute.xlu0 0
        %232 = vperm.xlu0 %231, %v229
        %v233 = vpop.permute.xlu0 %232
        %v235 = vunpack.c.l.s4 839922192
        %v236 = vunpack.c.0.s8 %v235
        %v237 = vlaneseq
        %v238 = vshrl.u32 %v237, 7
        %v239 = vsub.s32 %v236, %v238
        %v240 = vrot.slane %v233, %v239
        %v242 = vmul.f32 %v196, %v240
        %v244 = vcombine.high %v242, %v242
        %v246 = vsel %vm200, %v242, 0.0
        %v247 = vrot.slane %v246, 4
        %v248 = vadd.f32 %v246, %v247
        %v249 = vrot.slane %v248, 2
        %v250 = vadd.f32 %v248, %v249
        %v251 = vrot.slane %v250, 1
        %v252 = vadd.f32 %v250, %v251
        %v253 = vsel %vm200, %v244, 0.0
        %v254 = vrot.slane %v253, 4
        %v255 = vadd.f32 %v253, %v254
        %v256 = vrot.slane %v255, 2
        %v257 = vadd.f32 %v255, %v256
        %v258 = vrot.slane %v257, 1
        %v259 = vadd.f32 %v257, %v258
        %v260 = vxor.u32 %v252, 2147483648
        %v261 = vxor.u32 %v259, 2147483648
        %v262 = vmul.f32 %v260, 1.442695
        %v263 = vpow.pop %v262
        %v264 = vmul.f32 %v261, 1.442695
        %v265 = vpow.pop %v264
        %v266 = vadd.f32 %v263, 1.0
        %v267 = vadd.f32 %v265, 1.0
        %v268 = vrcp.pop %v266
        %v269 = vmul.f32 1.0, %v268
        %v270 = vrcp.pop %v267
        %v271 = vmul.f32 1.0, %v270
        %v272 = vadd.f32 %v269, %v228
        %v273 = vadd.f32 %v271, %v228
        %v276 = vcombine.low %v272, %v273
        %v278 = vmul.f32 %v196, %v276
        %279 = vst [vmem:[%s190] sm:$0xff] %v278
        %s280 = sand.u32 %s115, 1
        %s281 = scalar_lea.sflag [#allocation3], %s280
        %s282 = sand.u32 %s115, 1
        %s283 = smul.addr %s282, 8
        %s284 = scalar_lea.vmem [#allocation2], %s283
        // Predicated region
        $region37: #{tpu_custom_call.1} parent=35 // pred_check
          %p285 = pneg %p125
        $region38: #{tpu_custom_call.1} parent=35 // pred_check_branch
          %287 = sbr.rel (%p285) target = $region40
        $region39: #{tpu_custom_call.1} parent=35 // pred_region
          %s289 = ssub.s32 128, 128
          %290 = vsyncadd %s281, %s289
          %s291 = smul.addr %s18, 2
          %s292 = smul.addr %s291, 64
          %s293 = scalar_lea.hbm %s4, %s292
          %s295 = sshll.u32 %s284, 4
          %s296 = int_to_ptr.vmem [resolvable:$true] %s295
          %298 = dma.vmem_to_hbm [thread:$0]  %s296, 128, %s293, %s281
        $region40: #{tpu_custom_call.1} parent=35 // pred_fallthru
          _
      $region36: #{tpu_custom_call.1} parent=5 // pred_fallthru
        _
      %p299 = scmp.le.s32.totalorder 2, %s13
      // Predicated region
      $region41: #{tpu_custom_call.1} parent=5 // pred_check
        %p300 = pneg %p299
      $region42: #{tpu_custom_call.1} parent=5 // pred_check_branch
        %302 = sbr.rel (%p300) target = $region44
      $region43: #{tpu_custom_call.1} parent=5 // pred_region
        %s303 = ssub.s32 %s13, 2
        // Predicated region
        $region45: #{tpu_custom_call.1} parent=43 // pred_check
          %p304 = pneg %p131
        $region46: #{tpu_custom_call.1} parent=43 // pred_check_branch
          %306 = sbr.rel (%p304) target = $region48
        $region47: #{tpu_custom_call.1} parent=43 // pred_region
          %s307 = sand.u32 %s116, 1
          %s308 = scalar_lea.sflag [#allocation3], %s307
          %s309 = sand.u32 %s116, 1
          %s310 = smul.addr %s309, 8
          %s311 = scalar_lea.vmem [#allocation2], %s310
          %312 = dma.done %s308, 128
        $region48: #{tpu_custom_call.1} parent=43 // pred_fallthru
          _
      $region44: #{tpu_custom_call.1} parent=5 // pred_fallthru
        _
    $region6: #{tpu_custom_call.1} parent=1 // loop_footer
      %s17 = sadd.s32 1, %s13
    $region7: #{tpu_custom_call.1} parent=1 // loop_footer_branch
      %12 = sbr.rel target = $region3
    $region8: #{tpu_custom_call.1} parent=1 // loop_exit
      _
    %313 = vsyncpa [#allocation3], 1
    %s314 = scalar_lea.sflag [#allocation3], 1
    %315 = vsyncpa %s314, 1

</llo_original>
